<compile_context>
chip_gen: v5e
topology: v5e:2x2
jax: 0.10.0
libtpu: 0.0.40
codegen_flags: <defaults>
</compile_context>

<pallas_src>
import jax
import jax.numpy as jnp
from jax.experimental import pallas as pl
from jax.experimental.pallas import tpu as pltpu


def _net_kernel(x_ref, w_ref, b_ref, o_ref):
    """Fused 5-layer MLP forward for one batch tile.

    x_ref : [tm, size]        activation tile (f32)
    w_ref : [5, size, size]   per-layer weights, pre-transposed to [in, out]
    b_ref : [5, size]         per-layer biases
    o_ref : [tm, size]        output tile (f32)
    """
    h = x_ref[...].astype(jnp.float32)
    cdt = w_ref.dtype                                   # MXU input dtype (f32 or bf16)
    for l in range(5):                                  # static unroll -> 5 MXU matmuls
        w = w_ref[l]                                    # [size, size], static index
        b = b_ref[l:l + 1, :].astype(jnp.float32)       # [1, size]
        h = jnp.dot(h.astype(cdt), w, preferred_element_type=jnp.float32) + b
    o_ref[...] = h.astype(o_ref.dtype)


@jax.jit
def net_forward(x, w_all, b_all):
    """x: [batch, size] f32.
    w_all: [5, size, size] pre-transposed ([in, out]) weights (f32 or bf16).
    b_all: [5, size] biases (same dtype as w_all).
    Returns [batch, size] f32.
    """
    batch, size = x.shape

    # Batch tile: 256 rows feeds the 256-wide MXU on v6e/v7x; clamp for small batch.
    tm = min(batch, 256)
    grid = (pl.cdiv(batch, tm),)

    # VMEM budget: resident weights/biases + double-buffered activation/output tiles.
    itemsize = jnp.dtype(w_all.dtype).itemsize
    resident_bytes = 5 * size * size * itemsize + 5 * size * itemsize
    streamed_bytes = 2 * (2 * tm * size * 4)            # 2 bufs each for x and o (f32)
    vmem_limit = max(resident_bytes + streamed_bytes + (8 << 20), 32 << 20)
    vmem_limit = min(vmem_limit, 112 << 20)
    # NOTE: for very large `size` (5*size^2*itemsize > ~48 MiB) the resident-weight
    # plan exceeds v7x's 64 MiB VMEM; stream weights per layer (emit_pipeline) there.

    in_specs = [
        pl.BlockSpec((tm, size), lambda i: (i, 0)),           # activations: batch-tiled
        pl.BlockSpec((5, size, size), lambda i: (0, 0, 0)),   # weights: VMEM-resident
        pl.BlockSpec((5, size), lambda i: (0, 0)),            # biases:  VMEM-resident
    ]
    out_spec = pl.BlockSpec((tm, size), lambda i: (i, 0))

    return pl.pallas_call(
        _net_kernel,
        grid=grid,
        in_specs=in_specs,
        out_specs=out_spec,
        out_shape=jax.ShapeDtypeStruct((batch, size), jnp.float32),
        compiler_params=pltpu.CompilerParams(
            dimension_semantics=("parallel",),   # shard batch tiles across TCs (v7x)
            vmem_limit_bytes=int(vmem_limit),
        ),
    )(x, w_all, b_all)


def init_params(key, size, dtype=jnp.float32):
    """PyTorch-Linear-style init U(-1/sqrt(in), 1/sqrt(in)), returned already
    transposed ([in, out]) and packed — done ONCE, outside the jitted path."""
    bound = 1.0 / float(size) ** 0.5
    ws, bs = [], []
    for _ in range(5):
        kw, kb, key = jax.random.split(key, 3)
        w = jax.random.uniform(kw, (size, size), jnp.float32, -bound, bound)  # [out, in]
        b = jax.random.uniform(kb, (size,), jnp.float32, -bound, bound)
        ws.append(w.T)                                   # store as [in, out]
        bs.append(b)
    w_all = jnp.stack(ws).astype(dtype)                  # [5, size, size]
    b_all = jnp.stack(bs).astype(dtype)                  # [5, size]
    return w_all, b_all


def reference_forward(x, w_all, b_all):
    h = x
    for l in range(5):
        h = h @ w_all[l].astype(jnp.float32) + b_all[l].astype(jnp.float32)
    return h


if __name__ == "__main__":
    size = 128    # hidden width of Net(size)
    batch = 8

    key = jax.random.PRNGKey(0)
    kx, kp = jax.random.split(key)
    x = jax.random.normal(kx, (batch, size), jnp.float32)

    # f32 weights: exact (within tolerance) against the pure-JAX reference.
    w_all, b_all = init_params(kp, size, dtype=jnp.float32)
    out = jax.block_until_ready(net_forward(x, w_all, b_all))
    ref = reference_forward(x, w_all, b_all)
    assert out.shape == (batch, size)
    assert jnp.allclose(out, ref, atol=1e-4, rtol=1e-4), "f32 mismatch vs reference"

    # bf16 weights (halved HBM weight traffic, faster MXU) with f32 accumulation.
    w_bf16 = w_all.astype(jnp.bfloat16)
    b_bf16 = b_all.astype(jnp.bfloat16)
    out_bf16 = jax.block_until_ready(net_forward(x, w_bf16, b_bf16))
    assert jnp.allclose(out_bf16, ref, atol=5e-2, rtol=5e-2), "bf16 mismatch vs reference"

    print("KERNEL_OK")
</pallas_src>

<mosaic_0001>
module attributes {stable_mosaic.version = 11 : i64} {
  func.func @_net_kernel(%arg0: i32, %arg1: memref<8x128xf32, #tpu.memory_space<vmem>>, %arg2: memref<5x128x128xf32, #tpu.memory_space<vmem>>, %arg3: memref<5x128xf32, #tpu.memory_space<vmem>>, %arg4: memref<8x128xf32, #tpu.memory_space<vmem>>) attributes {dimension_semantics = [#tpu.dimension_semantics<parallel>], iteration_bounds = array<i64: 1>, scalar_prefetch = 0 : i64, scratch_operands = 0 : i64, tpu.core_type = #tpu.core_type<tc>, window_params = [{transform_indices = @transform_0, window_bounds = array<i64: 8, 128>}, {pipeline_mode = #tpu.pipeline_mode<synchronous>, transform_indices = @transform_1, window_bounds = array<i64: 5, 128, 128>}, {pipeline_mode = #tpu.pipeline_mode<synchronous>, transform_indices = @transform_2, window_bounds = array<i64: 5, 128>}, {transform_indices = @transform_3, window_bounds = array<i64: 8, 128>}]} {
    %c0 = arith.constant 0 : index
    %c0_0 = arith.constant 0 : index
    %0 = vector.load %arg1[%c0, %c0_0] : memref<8x128xf32, #tpu.memory_space<vmem>>, vector<8x128xf32>
    %c0_1 = arith.constant 0 : index
    %c0_2 = arith.constant 0 : index
    %c0_3 = arith.constant 0 : index
    %1 = vector.load %arg2[%c0_1, %c0_2, %c0_3] : memref<5x128x128xf32, #tpu.memory_space<vmem>>, vector<1x128x128xf32>
    %2 = vector.shape_cast %1 : vector<1x128x128xf32> to vector<128x128xf32>
    %c0_4 = arith.constant 0 : index
    %c0_5 = arith.constant 0 : index
    %3 = vector.load %arg3[%c0_4, %c0_5] : memref<5x128xf32, #tpu.memory_space<vmem>>, vector<1x128xf32>
    %cst = arith.constant dense<0.000000e+00> : vector<8x128xf32>
    %4 = tpu.matmul %0, %2, %cst {dimension_numbers = #tpu.dot_dimension_numbers<[1], [0], [0], [1], [0, 0, 1, 1], [], []>} : vector<8x128xf32>, vector<128x128xf32>, vector<8x128xf32> -> vector<8x128xf32>
    %5 = vector.broadcast %3 : vector<1x128xf32> to vector<8x128xf32>
    %6 = arith.addf %4, %5 : vector<8x128xf32>
    %c1 = arith.constant 1 : index
    %c0_6 = arith.constant 0 : index
    %c0_7 = arith.constant 0 : index
    %7 = vector.load %arg2[%c1, %c0_6, %c0_7] : memref<5x128x128xf32, #tpu.memory_space<vmem>>, vector<1x128x128xf32>
    %8 = vector.shape_cast %7 : vector<1x128x128xf32> to vector<128x128xf32>
    %c1_8 = arith.constant 1 : index
    %c0_9 = arith.constant 0 : index
    %9 = vector.load %arg3[%c1_8, %c0_9] : memref<5x128xf32, #tpu.memory_space<vmem>>, vector<1x128xf32>
    %cst_10 = arith.constant dense<0.000000e+00> : vector<8x128xf32>
    %10 = tpu.matmul %6, %8, %cst_10 {dimension_numbers = #tpu.dot_dimension_numbers<[1], [0], [0], [1], [0, 0, 1, 1], [], []>} : vector<8x128xf32>, vector<128x128xf32>, vector<8x128xf32> -> vector<8x128xf32>
    %11 = vector.broadcast %9 : vector<1x128xf32> to vector<8x128xf32>
    %12 = arith.addf %10, %11 : vector<8x128xf32>
    %c2 = arith.constant 2 : index
    %c0_11 = arith.constant 0 : index
    %c0_12 = arith.constant 0 : index
    %13 = vector.load %arg2[%c2, %c0_11, %c0_12] : memref<5x128x128xf32, #tpu.memory_space<vmem>>, vector<1x128x128xf32>
    %14 = vector.shape_cast %13 : vector<1x128x128xf32> to vector<128x128xf32>
    %c2_13 = arith.constant 2 : index
    %c0_14 = arith.constant 0 : index
    %15 = vector.load %arg3[%c2_13, %c0_14] : memref<5x128xf32, #tpu.memory_space<vmem>>, vector<1x128xf32>
    %cst_15 = arith.constant dense<0.000000e+00> : vector<8x128xf32>
    %16 = tpu.matmul %12, %14, %cst_15 {dimension_numbers = #tpu.dot_dimension_numbers<[1], [0], [0], [1], [0, 0, 1, 1], [], []>} : vector<8x128xf32>, vector<128x128xf32>, vector<8x128xf32> -> vector<8x128xf32>
    %17 = vector.broadcast %15 : vector<1x128xf32> to vector<8x128xf32>
    %18 = arith.addf %16, %17 : vector<8x128xf32>
    %c3 = arith.constant 3 : index
    %c0_16 = arith.constant 0 : index
    %c0_17 = arith.constant 0 : index
    %19 = vector.load %arg2[%c3, %c0_16, %c0_17] : memref<5x128x128xf32, #tpu.memory_space<vmem>>, vector<1x128x128xf32>
    %20 = vector.shape_cast %19 : vector<1x128x128xf32> to vector<128x128xf32>
    %c3_18 = arith.constant 3 : index
    %c0_19 = arith.constant 0 : index
    %21 = vector.load %arg3[%c3_18, %c0_19] : memref<5x128xf32, #tpu.memory_space<vmem>>, vector<1x128xf32>
    %cst_20 = arith.constant dense<0.000000e+00> : vector<8x128xf32>
    %22 = tpu.matmul %18, %20, %cst_20 {dimension_numbers = #tpu.dot_dimension_numbers<[1], [0], [0], [1], [0, 0, 1, 1], [], []>} : vector<8x128xf32>, vector<128x128xf32>, vector<8x128xf32> -> vector<8x128xf32>
    %23 = vector.broadcast %21 : vector<1x128xf32> to vector<8x128xf32>
    %24 = arith.addf %22, %23 : vector<8x128xf32>
    %c4 = arith.constant 4 : index
    %c0_21 = arith.constant 0 : index
    %c0_22 = arith.constant 0 : index
    %25 = vector.load %arg2[%c4, %c0_21, %c0_22] : memref<5x128x128xf32, #tpu.memory_space<vmem>>, vector<1x128x128xf32>
    %26 = vector.shape_cast %25 : vector<1x128x128xf32> to vector<128x128xf32>
    %c4_23 = arith.constant 4 : index
    %c0_24 = arith.constant 0 : index
    %27 = vector.load %arg3[%c4_23, %c0_24] : memref<5x128xf32, #tpu.memory_space<vmem>>, vector<1x128xf32>
    %cst_25 = arith.constant dense<0.000000e+00> : vector<8x128xf32>
    %28 = tpu.matmul %24, %26, %cst_25 {dimension_numbers = #tpu.dot_dimension_numbers<[1], [0], [0], [1], [0, 0, 1, 1], [], []>} : vector<8x128xf32>, vector<128x128xf32>, vector<8x128xf32> -> vector<8x128xf32>
    %29 = vector.broadcast %27 : vector<1x128xf32> to vector<8x128xf32>
    %30 = arith.addf %28, %29 : vector<8x128xf32>
    %c0_26 = arith.constant 0 : index
    %c0_27 = arith.constant 0 : index
    %31 = vector.load %arg4[%c0_26, %c0_27] : memref<8x128xf32, #tpu.memory_space<vmem>>, vector<8x128xf32>
    tpu.vector_store %arg4[%c0_26, %c0_27], %30 {strides = array<i32>} : memref<8x128xf32, #tpu.memory_space<vmem>>, vector<8x128xf32>,
    return
  }
  func.func @transform_0(%arg0: i32) -> (i32, i32) {
    %c0_i32 = arith.constant 0 : i32
    %c0_i32_0 = arith.constant 0 : i32
    return %arg0, %c0_i32 : i32, i32
  }
  func.func @transform_1(%arg0: i32) -> (i32, i32, i32) {
    %c0_i32 = arith.constant 0 : i32
    %c0_i32_0 = arith.constant 0 : i32
    %c0_i32_1 = arith.constant 0 : i32
    %c0_i32_2 = arith.constant 0 : i32
    return %c0_i32, %c0_i32_0, %c0_i32_1 : i32, i32, i32
  }
  func.func @transform_2(%arg0: i32) -> (i32, i32) {
    %c0_i32 = arith.constant 0 : i32
    %c0_i32_0 = arith.constant 0 : i32
    %c0_i32_1 = arith.constant 0 : i32
    return %c0_i32, %c0_i32_0 : i32, i32
  }
  func.func @transform_3(%arg0: i32) -> (i32, i32) {
    %c0_i32 = arith.constant 0 : i32
    %c0_i32_0 = arith.constant 0 : i32
    return %arg0, %c0_i32 : i32, i32
  }
}

</mosaic_0001>

<llo_original>
// kernel: net_forward.1
$region0: #{net_forward.1}
  #allocation0 [shape = 'u32[]', space=smem, size = 0x4, offset = 0x4, fixed_abs, tag = 'smem constant byte address 0x4 - core index']
  #allocation1 [shape = 'u32[72,128]{1,0:T(1,128)}', space=vmem, size = 0x9000, scoped, tag = 'internal scratch']
  %s0 = inlined_call_operand.hbm [shape: f32[8,128], index: 0, kind: input, shape index: {}]
  %s1 = inlined_call_operand.hbm [shape: f32[5,128,128], index: 1, kind: input, shape index: {}]
  %s2 = inlined_call_operand.hbm [shape: f32[5,128], index: 2, kind: input, shape index: {}]
  %s3 = inlined_call_operand.hbm [shape: f32[8,128], index: 3, kind: output, shape index: {}]
  %s4 = sld [smem:[#allocation0]]
  $region34: #{net_forward.1} parent=0
    _
  %s6 = ssub.s32 1, %s4
  %s7 = scalar_select 0, %s6, %s4
  $region1: #{net_forward.1} parent=0
    #allocation2 [shape = 'u8[4096]{0}', space=vmem, size = 0x1000, scoped, tag = 'input window, operand 0, single buffered']
    #allocation3 [shape = 's32[1]{0}', space=sflag, size = 0x4, scoped, tag = 'scoped memory for net_forward.1']
    #allocation4 [shape = 's32[1]{0}', space=sflag, size = 0x4, scoped, tag = 'scoped memory for net_forward.1']
    #allocation5 [shape = 'u8[327680]{0}', space=vmem, size = 0x50000, scoped, tag = 'input window, operand 1, single buffered']
    #allocation6 [shape = 's32[1]{0}', space=sflag, size = 0x4, scoped, tag = 'scoped memory for net_forward.1']
    #allocation7 [shape = 'u8[4096]{0}', space=vmem, size = 0x1000, scoped, tag = 'input window, operand 2, single buffered']
    #allocation8 [shape = 'u8[4096]{0}', space=vmem, size = 0x1000, scoped, tag = 'output window, operand 0, single buffered']
    %8 = vsyncpa [#allocation3], 0
    %9 = vsyncpa [#allocation6], 0
    %10 = vsyncpa [#allocation4], 0
    // Predicated region
    $region2: #{net_forward.1} parent=1 // pred_check
      _
    $region3: #{net_forward.1} parent=1 // pred_check_branch
      %12 = sbr.rel (0) target = $region5
    $region4: #{net_forward.1} parent=1 // pred_region
      %14 = vsyncadd [#allocation3], 0
      %s16 = sshll.u32 %s0, 4
      %s17 = int_to_ptr.hbm [resolvable:$true] %s16
      %s18 = sshll.u32 [#allocation2], 4
      %s19 = int_to_ptr.vmem [resolvable:$true] %s18
      %21 = dma.hbm_to_vmem [thread:$0]  %s17, 128, %s19, [#allocation3]
    $region5: #{net_forward.1} parent=1 // pred_fallthru
      _
    // Predicated region
    $region6: #{net_forward.1} parent=1 // pred_check
      _
    $region7: #{net_forward.1} parent=1 // pred_check_branch
      %23 = sbr.rel (0) target = $region9
    $region8: #{net_forward.1} parent=1 // pred_region
      %25 = vsyncadd [#allocation6], 0
      %s26 = sshll.u32 %s1, 4
      %s27 = int_to_ptr.hbm [resolvable:$true] %s26
      %s28 = sshll.u32 [#allocation5], 4
      %s29 = int_to_ptr.vmem [resolvable:$true] %s28
      %34 = dma.hbm_to_vmem [thread:$0]  %s27, 10240, %s29, [#allocation6], 128, 128, 8
    $region9: #{net_forward.1} parent=1 // pred_fallthru
      _
    // Predicated region
    $region10: #{net_forward.1} parent=1 // pred_check
      _
    $region11: #{net_forward.1} parent=1 // pred_check_branch
      %36 = sbr.rel (0) target = $region13
    $region12: #{net_forward.1} parent=1 // pred_region
      %38 = vsyncadd [#allocation6], 0
      %s40 = sshll.u32 %s2, 4
      %s41 = int_to_ptr.hbm [resolvable:$true] %s40
      %s42 = sshll.u32 [#allocation7], 4
      %s43 = int_to_ptr.vmem [resolvable:$true] %s42
      %45 = dma.hbm_to_vmem [thread:$0]  %s41, 128, %s43, [#allocation6]
    $region13: #{net_forward.1} parent=1 // pred_fallthru
      _
    // Predicated region
    $region14: #{net_forward.1} parent=1 // pred_check
      _
    $region15: #{net_forward.1} parent=1 // pred_check_branch
      %47 = sbr.rel (0) target = $region17
    $region16: #{net_forward.1} parent=1 // pred_region
      %49 = dma.done [#allocation3], 128
    $region17: #{net_forward.1} parent=1 // pred_fallthru
      _
    // Predicated region
    $region18: #{net_forward.1} parent=1 // pred_check
      _
    $region19: #{net_forward.1} parent=1 // pred_check_branch
      %51 = sbr.rel (0) target = $region21
    $region20: #{net_forward.1} parent=1 // pred_region
      %53 = dma.done [#allocation6], 10240
    $region21: #{net_forward.1} parent=1 // pred_fallthru
      _
    // Predicated region
    $region22: #{net_forward.1} parent=1 // pred_check
      _
    $region23: #{net_forward.1} parent=1 // pred_check_branch
      %55 = sbr.rel (0) target = $region25
    $region24: #{net_forward.1} parent=1 // pred_region
      %57 = dma.done [#allocation6], 128
    $region25: #{net_forward.1} parent=1 // pred_fallthru
      _
    %v58 = vld [vmem:[#allocation2] sm:$0xff]
    %v59 = vld [vmem:[#allocation5] sm:$0xff]
    %v60 = vld [vmem:[#allocation5 + $0x8] sm:$0xff]
    %v61 = vld [vmem:[#allocation5 + $0x10] sm:$0xff]
    %v62 = vld [vmem:[#allocation5 + $0x18] sm:$0xff]
    %v63 = vld [vmem:[#allocation5 + $0x20] sm:$0xff]
    %v64 = vld [vmem:[#allocation5 + $0x28] sm:$0xff]
    %v65 = vld [vmem:[#allocation5 + $0x30] sm:$0xff]
    %v66 = vld [vmem:[#allocation5 + $0x38] sm:$0xff]
    %v67 = vld [vmem:[#allocation5 + $0x40] sm:$0xff]
    %v68 = vld [vmem:[#allocation5 + $0x48] sm:$0xff]
    %v69 = vld [vmem:[#allocation5 + $0x50] sm:$0xff]
    %v70 = vld [vmem:[#allocation5 + $0x58] sm:$0xff]
    %v71 = vld [vmem:[#allocation5 + $0x60] sm:$0xff]
    %v72 = vld [vmem:[#allocation5 + $0x68] sm:$0xff]
    %v73 = vld [vmem:[#allocation5 + $0x70] sm:$0xff]
    %v74 = vld [vmem:[#allocation5 + $0x78] sm:$0xff]
    %v75 = vld [vmem:[#allocation7] sm:$0x1]
    %v76 = vperm.slane %v75, 0
    %77 = vmatpush.msra.mxu0 %v74
    %78 = vmatpush.msra.mxu0 %v73
    %79 = vmatpush.msra.mxu0 %v72
    %80 = vmatpush.msra.mxu0 %v71
    %81 = vmatpush.msra.mxu0 %v70
    %82 = vmatpush.msra.mxu0 %v69
    %83 = vmatpush.msra.mxu0 %v68
    %84 = vmatpush.msra.mxu0 %v67
    %85 = vmatpush.msra.mxu0 %v66
    %86 = vmatpush.msra.mxu0 %v65
    %87 = vmatpush.msra.mxu0 %v64
    %88 = vmatpush.msra.mxu0 %v63
    %89 = vmatpush.msra.mxu0 %v62
    %90 = vmatpush.msra.mxu0 %v61
    %91 = vmatpush.msra.mxu0 %v60
    %92 = vmatpush.msra.mxu0 %v59
    %93 = vmatmul.f32.gmra.mxu0 %v58
    %v94 = vpop.f32.mrf.mxu0
    %v95 = vadd.f32 %v76, %v94
    %96 = vdwg.mxu0
    %s97 = scalar_lea.vmem [#allocation5], 128
    %v98 = vld [vmem:[%s97] sm:$0xff]
    %v99 = vld [vmem:[%s97 + $0x8] sm:$0xff]
    %v100 = vld [vmem:[%s97 + $0x10] sm:$0xff]
    %v101 = vld [vmem:[%s97 + $0x18] sm:$0xff]
    %v102 = vld [vmem:[%s97 + $0x20] sm:$0xff]
    %v103 = vld [vmem:[%s97 + $0x28] sm:$0xff]
    %v104 = vld [vmem:[%s97 + $0x30] sm:$0xff]
    %v105 = vld [vmem:[%s97 + $0x38] sm:$0xff]
    %v106 = vld [vmem:[%s97 + $0x40] sm:$0xff]
    %v107 = vld [vmem:[%s97 + $0x48] sm:$0xff]
    %v108 = vld [vmem:[%s97 + $0x50] sm:$0xff]
    %v109 = vld [vmem:[%s97 + $0x58] sm:$0xff]
    %v110 = vld [vmem:[%s97 + $0x60] sm:$0xff]
    %v111 = vld [vmem:[%s97 + $0x68] sm:$0xff]
    %v112 = vld [vmem:[%s97 + $0x70] sm:$0xff]
    %v113 = vld [vmem:[%s97 + $0x78] sm:$0xff]
    %v114 = vld [vmem:[#allocation7 + $0x1] sm:$0x1]
    %v115 = vperm.slane %v114, 0
    %116 = vmatpush.msra.mxu0 %v113
    %117 = vmatpush.msra.mxu0 %v112
    %118 = vmatpush.msra.mxu0 %v111
    %119 = vmatpush.msra.mxu0 %v110
    %120 = vmatpush.msra.mxu0 %v109
    %121 = vmatpush.msra.mxu0 %v108
    %122 = vmatpush.msra.mxu0 %v107
    %123 = vmatpush.msra.mxu0 %v106
    %124 = vmatpush.msra.mxu0 %v105
    %125 = vmatpush.msra.mxu0 %v104
    %126 = vmatpush.msra.mxu0 %v103
    %127 = vmatpush.msra.mxu0 %v102
    %128 = vmatpush.msra.mxu0 %v101
    %129 = vmatpush.msra.mxu0 %v100
    %130 = vmatpush.msra.mxu0 %v99
    %131 = vmatpush.msra.mxu0 %v98
    %132 = vmatmul.f32.gmra.mxu0 %v95
    %v133 = vpop.f32.mrf.mxu0
    %v134 = vadd.f32 %v115, %v133
    %135 = vdwg.mxu0
    %s136 = scalar_lea.vmem [#allocation5], 256
    %v137 = vld [vmem:[%s136] sm:$0xff]
    %v138 = vld [vmem:[%s136 + $0x8] sm:$0xff]
    %v139 = vld [vmem:[%s136 + $0x10] sm:$0xff]
    %v140 = vld [vmem:[%s136 + $0x18] sm:$0xff]
    %v141 = vld [vmem:[%s136 + $0x20] sm:$0xff]
    %v142 = vld [vmem:[%s136 + $0x28] sm:$0xff]
    %v143 = vld [vmem:[%s136 + $0x30] sm:$0xff]
    %v144 = vld [vmem:[%s136 + $0x38] sm:$0xff]
    %v145 = vld [vmem:[%s136 + $0x40] sm:$0xff]
    %v146 = vld [vmem:[%s136 + $0x48] sm:$0xff]
    %v147 = vld [vmem:[%s136 + $0x50] sm:$0xff]
    %v148 = vld [vmem:[%s136 + $0x58] sm:$0xff]
    %v149 = vld [vmem:[%s136 + $0x60] sm:$0xff]
    %v150 = vld [vmem:[%s136 + $0x68] sm:$0xff]
    %v151 = vld [vmem:[%s136 + $0x70] sm:$0xff]
    %v152 = vld [vmem:[%s136 + $0x78] sm:$0xff]
    %v153 = vld [vmem:[#allocation7 + $0x2] sm:$0x1]
    %v154 = vperm.slane %v153, 0
    %155 = vmatpush.msra.mxu0 %v152
    %156 = vmatpush.msra.mxu0 %v151
    %157 = vmatpush.msra.mxu0 %v150
    %158 = vmatpush.msra.mxu0 %v149
    %159 = vmatpush.msra.mxu0 %v148
    %160 = vmatpush.msra.mxu0 %v147
    %161 = vmatpush.msra.mxu0 %v146
    %162 = vmatpush.msra.mxu0 %v145
    %163 = vmatpush.msra.mxu0 %v144
    %164 = vmatpush.msra.mxu0 %v143
    %165 = vmatpush.msra.mxu0 %v142
    %166 = vmatpush.msra.mxu0 %v141
    %167 = vmatpush.msra.mxu0 %v140
    %168 = vmatpush.msra.mxu0 %v139
    %169 = vmatpush.msra.mxu0 %v138
    %170 = vmatpush.msra.mxu0 %v137
    %171 = vmatmul.f32.gmra.mxu0 %v134
    %v172 = vpop.f32.mrf.mxu0
    %v173 = vadd.f32 %v154, %v172
    %174 = vdwg.mxu0
    %s175 = scalar_lea.vmem [#allocation5], 384
    %v176 = vld [vmem:[%s175] sm:$0xff]
    %v177 = vld [vmem:[%s175 + $0x8] sm:$0xff]
    %v178 = vld [vmem:[%s175 + $0x10] sm:$0xff]
    %v179 = vld [vmem:[%s175 + $0x18] sm:$0xff]
    %v180 = vld [vmem:[%s175 + $0x20] sm:$0xff]
    %v181 = vld [vmem:[%s175 + $0x28] sm:$0xff]
    %v182 = vld [vmem:[%s175 + $0x30] sm:$0xff]
    %v183 = vld [vmem:[%s175 + $0x38] sm:$0xff]
    %v184 = vld [vmem:[%s175 + $0x40] sm:$0xff]
    %v185 = vld [vmem:[%s175 + $0x48] sm:$0xff]
    %v186 = vld [vmem:[%s175 + $0x50] sm:$0xff]
    %v187 = vld [vmem:[%s175 + $0x58] sm:$0xff]
    %v188 = vld [vmem:[%s175 + $0x60] sm:$0xff]
    %v189 = vld [vmem:[%s175 + $0x68] sm:$0xff]
    %v190 = vld [vmem:[%s175 + $0x70] sm:$0xff]
    %v191 = vld [vmem:[%s175 + $0x78] sm:$0xff]
    %v192 = vld [vmem:[#allocation7 + $0x3] sm:$0x1]
    %v193 = vperm.slane %v192, 0
    %194 = vmatpush.msra.mxu0 %v191
    %195 = vmatpush.msra.mxu0 %v190
    %196 = vmatpush.msra.mxu0 %v189
    %197 = vmatpush.msra.mxu0 %v188
    %198 = vmatpush.msra.mxu0 %v187
    %199 = vmatpush.msra.mxu0 %v186
    %200 = vmatpush.msra.mxu0 %v185
    %201 = vmatpush.msra.mxu0 %v184
    %202 = vmatpush.msra.mxu0 %v183
    %203 = vmatpush.msra.mxu0 %v182
    %204 = vmatpush.msra.mxu0 %v181
    %205 = vmatpush.msra.mxu0 %v180
    %206 = vmatpush.msra.mxu0 %v179
    %207 = vmatpush.msra.mxu0 %v178
    %208 = vmatpush.msra.mxu0 %v177
    %209 = vmatpush.msra.mxu0 %v176
    %210 = vmatmul.f32.gmra.mxu0 %v173
    %v211 = vpop.f32.mrf.mxu0
    %v212 = vadd.f32 %v193, %v211
    %213 = vdwg.mxu0
    %s214 = scalar_lea.vmem [#allocation5], 512
    %v215 = vld [vmem:[%s214] sm:$0xff]
    %v216 = vld [vmem:[%s214 + $0x8] sm:$0xff]
    %v217 = vld [vmem:[%s214 + $0x10] sm:$0xff]
    %v218 = vld [vmem:[%s214 + $0x18] sm:$0xff]
    %v219 = vld [vmem:[%s214 + $0x20] sm:$0xff]
    %v220 = vld [vmem:[%s214 + $0x28] sm:$0xff]
    %v221 = vld [vmem:[%s214 + $0x30] sm:$0xff]
    %v222 = vld [vmem:[%s214 + $0x38] sm:$0xff]
    %v223 = vld [vmem:[%s214 + $0x40] sm:$0xff]
    %v224 = vld [vmem:[%s214 + $0x48] sm:$0xff]
    %v225 = vld [vmem:[%s214 + $0x50] sm:$0xff]
    %v226 = vld [vmem:[%s214 + $0x58] sm:$0xff]
    %v227 = vld [vmem:[%s214 + $0x60] sm:$0xff]
    %v228 = vld [vmem:[%s214 + $0x68] sm:$0xff]
    %v229 = vld [vmem:[%s214 + $0x70] sm:$0xff]
    %v230 = vld [vmem:[%s214 + $0x78] sm:$0xff]
    %v231 = vld [vmem:[#allocation7 + $0x4] sm:$0x1]
    %v232 = vperm.slane %v231, 0
    %233 = vmatpush.msra.mxu0 %v230
    %234 = vmatpush.msra.mxu0 %v229
    %235 = vmatpush.msra.mxu0 %v228
    %236 = vmatpush.msra.mxu0 %v227
    %237 = vmatpush.msra.mxu0 %v226
    %238 = vmatpush.msra.mxu0 %v225
    %239 = vmatpush.msra.mxu0 %v224
    %240 = vmatpush.msra.mxu0 %v223
    %241 = vmatpush.msra.mxu0 %v222
    %242 = vmatpush.msra.mxu0 %v221
    %243 = vmatpush.msra.mxu0 %v220
    %244 = vmatpush.msra.mxu0 %v219
    %245 = vmatpush.msra.mxu0 %v218
    %246 = vmatpush.msra.mxu0 %v217
    %247 = vmatpush.msra.mxu0 %v216
    %248 = vmatpush.msra.mxu0 %v215
    %249 = vmatmul.f32.gmra.mxu0 %v212
    %v250 = vpop.f32.mrf.mxu0
    %v251 = vadd.f32 %v232, %v250
    %252 = vdwg.mxu0
    %253 = vst [vmem:[#allocation8] sm:$0xff] %v251
    // Predicated region
    $region26: #{net_forward.1} parent=1 // pred_check
      _
    $region27: #{net_forward.1} parent=1 // pred_check_branch
      %255 = sbr.rel (0) target = $region29
    $region28: #{net_forward.1} parent=1 // pred_region
      %257 = vsyncadd [#allocation4], 0
      %s259 = sshll.u32 [#allocation8], 4
      %s260 = int_to_ptr.vmem [resolvable:$true] %s259
      %s261 = sshll.u32 %s3, 4
      %s262 = int_to_ptr.hbm [resolvable:$true] %s261
      %264 = dma.vmem_to_hbm [thread:$0]  %s260, 128, %s262, [#allocation4]
    $region29: #{net_forward.1} parent=1 // pred_fallthru
      _
    // Predicated region
    $region30: #{net_forward.1} parent=1 // pred_check
      _
    $region31: #{net_forward.1} parent=1 // pred_check_branch
      %266 = sbr.rel (0) target = $region33
    $region32: #{net_forward.1} parent=1 // pred_region
      %268 = dma.done [#allocation4], 128
    $region33: #{net_forward.1} parent=1 // pred_fallthru
      _
    %269 = vsyncpa [#allocation3], 1
    %270 = vsyncpa [#allocation6], 1
    %271 = vsyncpa [#allocation4], 1

</llo_original>
